<compile_context>
chip_gen: v7x
topology: tpu7x:2x2x1
jax: 0.10.0
libtpu: 0.0.40
codegen_flags: <defaults>
</compile_context>

<pallas_src>
import math

import jax
import jax.numpy as jnp
from jax.experimental import pallas as pl
from jax.experimental.pallas import tpu as pltpu


# ----------------------------------------------------------------------------
# Pallas kernel: Conv1d(E, out_dim, kernel_size=1) over flattened rows
#   out[m, o] = sum_e h[m, e] * W[e, o] + bias[o]
# ----------------------------------------------------------------------------
def _bottleneck_kernel(h_ref, w_ref, b_ref, o_ref):
    # h_ref : (tm, E)        hidden-state row tile
    # w_ref : (E, out_dim)   projection matrix (bf16), resident across all steps
    # b_ref : (1, out_dim)   bias row (f32), resident across all steps
    # o_ref : (tm, out_dim)  output tile (lane-dense: out_dim % 128 == 0)
    # Explicit: the MXU runs in the weight dtype (bf16).  If the hidden arrives
    # as f32 this is an intentional downcast (precision below the f32 Conv1d).
    h = h_ref[...].astype(w_ref.dtype)
    acc = jnp.dot(h, w_ref[...], preferred_element_type=jnp.float32)   # MXU, f32 acc
    o_ref[...] = (acc + b_ref[...]).astype(o_ref.dtype)


def _pick_tm(M, *, max_tm=1024, target_steps=4):
    """Row tile: multiple of 16, capped at max_tm, aiming for >= target_steps grid
    steps so each v7x TensorCore sees >= 2 steps (per-core pipelining)."""
    tm = pl.cdiv(M, target_steps)
    tm = ((tm + 15) // 16) * 16          # bf16 packs 2 rows per sublane
    return max(16, min(max_tm, tm))


def prepare_bottleneck_params(weight, bias, *, compute_dtype=jnp.bfloat16):
    """Hoisted once per module: Conv1d weight (out_dim, E, 1) -> (E, out_dim) in the
    MXU compute dtype, bias -> (1, out_dim) f32 row."""
    out_dim = weight.shape[0]
    w_mat = jnp.transpose(weight[:, :, 0], (1, 0)).astype(compute_dtype)   # (E, out_dim)
    b_row = bias.astype(jnp.float32).reshape(1, out_dim)                   # (1, out_dim)
    return w_mat, b_row


def bottleneck_conv1d_k1(hidden, w_mat, b_row, *,
                         max_tm=1024, out_dtype=None, min_rows_for_pallas=1024):
    """Conv1d(E, out_dim, kernel_size=1) over hidden of shape (B, S, E).

    hidden: (B, S, E)   bf16 recommended (f32 is downcast to the weight dtype)
    w_mat:  (E, out_dim) prepared weight (see prepare_bottleneck_params)
    b_row:  (1, out_dim) prepared f32 bias row
    returns (B, S, out_dim) in `out_dtype` (default: hidden.dtype; fp8 possible on v7x)
    """
    B, S, E = hidden.shape
    out_dim = w_mat.shape[1]
    out_dtype = hidden.dtype if out_dtype is None else out_dtype

    M = B * S
    h_flat = hidden.reshape(M, E)        # trailing-dim merge: no copy

    if M < min_rows_for_pallas:
        # Small-M fallback: pallas_call launch + DMA setup would dominate.  Same
        # bf16 weight + f32 accumulation as the kernel -> no path-dependent numerics.
        out = jnp.dot(h_flat.astype(w_mat.dtype), w_mat,
                      preferred_element_type=jnp.float32) + b_row
        return out.astype(out_dtype).reshape(B, S, out_dim)

    tm = _pick_tm(M, max_tm=max_tm)
    grid = (pl.cdiv(M, tm),)   # ragged last block -> masked partial DMA/stores

    out_flat = pl.pallas_call(
        _bottleneck_kernel,
        out_shape=jax.ShapeDtypeStruct((M, out_dim), out_dtype),
        grid_spec=pltpu.PrefetchScalarGridSpec(
            num_scalar_prefetch=0,
            grid=grid,
            in_specs=[
                pl.BlockSpec((tm, E), lambda i: (i, 0)),          # hidden row tile
                pl.BlockSpec((E, out_dim), lambda i: (0, 0)),     # weight resident in VMEM
                pl.BlockSpec((1, out_dim), lambda i: (0, 0)),     # bias resident in VMEM
            ],
            out_specs=pl.BlockSpec((tm, out_dim), lambda i: (i, 0)),
        ),
        compiler_params=pltpu.CompilerParams(
            dimension_semantics=("parallel",),
        ),
    )(h_flat, w_mat, b_row)

    return out_flat.reshape(B, S, out_dim)


# ----------------------------------------------------------------------------
# MoleculeEncoder (JAX side)
# ----------------------------------------------------------------------------
class MoleculeEncoderPallas:
    def __init__(self, embed_dim=32, out_dim=256, seed=0):
        self.embed_dim = embed_dim
        self.out_dim = out_dim
        key = jax.random.PRNGKey(seed)
        kw, kb = jax.random.split(key)
        # nn.Conv1d(embed_dim, out_dim, 1): weight (out_dim, embed_dim, 1), bias (out_dim,)
        fan_in = embed_dim * 1
        bound = 1.0 / math.sqrt(fan_in)
        self.weight = jax.random.uniform(
            kw, (out_dim, embed_dim, 1), jnp.float32, -bound, bound)
        self.bias = jax.random.uniform(
            kb, (out_dim,), jnp.float32, -bound, bound)
        # Hoisted out of the per-call path (review item): transpose + bf16 cast +
        # bias reshape happen exactly once.
        self.w_mat, self.b_row = prepare_bottleneck_params(self.weight, self.bias)

    def __call__(self, x):
        input_ids = x["molecule_sequence"]["input_ids"]              # (B, S) int32
        _attention_mask = x["molecule_sequence"]["attention_mask"]   # consumed only by
        # the frozen encoder below; the Conv1d bottleneck does NOT mask its input
        # (matches the PyTorch forward).
        B, S = input_ids.shape

        # TODO(synk): the frozen pretrained AutoModel encoder (tokenizer + transformer
        # stack, which is what consumes input_ids/attention_mask) has no checkpoint-free
        # Pallas equivalent; its encoder_last_hidden_state is stood in by a deterministic
        # bf16 tensor derived from a fixed key.
        key = jax.random.fold_in(jax.random.PRNGKey(42), 0)
        hidden = jax.random.normal(key, (B, S, self.embed_dim), jnp.bfloat16)

        # permute(0,2,1) -> Conv1d(k=1) -> permute(0,2,1)  ==  per-position matmul.
        return bottleneck_conv1d_k1(hidden, self.w_mat, self.b_row)


if __name__ == "__main__":
    B, S, E, OUT = 2, 8, 32, 256

    key = jax.random.PRNGKey(0)
    k_ids, k_hid = jax.random.split(key, 2)
    input_ids = jax.random.randint(k_ids, (B, S), 0, 100, dtype=jnp.int32)
    attention_mask = jnp.ones((B, S), dtype=jnp.int32)
    x = {"molecule_sequence": {"input_ids": input_ids,
                               "attention_mask": attention_mask}}

    # --- module-sized demo (M = B*S = 16 -> small-M fallback path) ----------
    enc = MoleculeEncoderPallas(embed_dim=E, out_dim=OUT, seed=0)
    out_small = jax.block_until_ready(enc(x))
    assert out_small.shape == (B, S, OUT), out_small.shape

    hidden_small = jax.random.normal(
        jax.random.fold_in(jax.random.PRNGKey(42), 0), (B, S, E), jnp.bfloat16)
    w_f32 = enc.w_mat.astype(jnp.float32)
    ref_small = (jnp.einsum("bse,eo->bso", hidden_small.astype(jnp.float32), w_f32)
                 + enc.bias[None, None, :])
    assert jnp.allclose(out_small.astype(jnp.float32), ref_small, atol=5e-2, rtol=5e-2)

    # --- Pallas path: larger M with a ragged last tile ----------------------
    Bp, Sp = 4, 333                      # M = 1332 rows -> Pallas kernel, grid of 4
    hidden_p = jax.random.normal(k_hid, (Bp, Sp, E), jnp.bfloat16)

    out_p = bottleneck_conv1d_k1(hidden_p, enc.w_mat, enc.b_row)
    out_p = jax.block_until_ready(out_p)
    assert out_p.shape == (Bp, Sp, OUT), out_p.shape

    ref_p = (jnp.einsum("bse,eo->bso", hidden_p.astype(jnp.float32), w_f32)
             + enc.bias[None, None, :])
    err = float(jnp.max(jnp.abs(out_p.astype(jnp.float32) - ref_p)))
    assert jnp.allclose(out_p.astype(jnp.float32), ref_p, atol=5e-2, rtol=5e-2), err

    print("KERNEL_OK")
</pallas_src>

<mosaic_0001>
module attributes {stable_mosaic.version = 11 : i64} {
  func.func @_bottleneck_kernel(%arg0: i32, %arg1: memref<336x32xbf16, #tpu.memory_space<vmem>>, %arg2: memref<32x256xbf16, #tpu.memory_space<vmem>>, %arg3: memref<1x256xf32, #tpu.memory_space<vmem>>, %arg4: memref<336x256xbf16, #tpu.memory_space<vmem>>) attributes {dimension_semantics = [#tpu.dimension_semantics<parallel>], iteration_bounds = array<i64: 4>, scalar_prefetch = 0 : i64, scratch_operands = 0 : i64, tpu.core_type = #tpu.core_type<tc>, window_params = [{transform_indices = @transform_0, window_bounds = array<i64: 336, 32>}, {pipeline_mode = #tpu.pipeline_mode<synchronous>, transform_indices = @transform_1, window_bounds = array<i64: 32, 256>}, {pipeline_mode = #tpu.pipeline_mode<synchronous>, transform_indices = @transform_2, window_bounds = array<i64: 1, 256>}, {transform_indices = @transform_3, window_bounds = array<i64: 336, 256>}]} {
    %c0 = arith.constant 0 : index
    %c0_0 = arith.constant 0 : index
    %0 = vector.load %arg1[%c0, %c0_0] : memref<336x32xbf16, #tpu.memory_space<vmem>>, vector<336x32xbf16>
    %c0_1 = arith.constant 0 : index
    %c0_2 = arith.constant 0 : index
    %1 = vector.load %arg2[%c0_1, %c0_2] : memref<32x256xbf16, #tpu.memory_space<vmem>>, vector<32x256xbf16>
    %cst = arith.constant dense<0.000000e+00> : vector<336x256xf32>
    %2 = tpu.matmul %0, %1, %cst {dimension_numbers = #tpu.dot_dimension_numbers<[1], [0], [0], [1], [0, 0, 1, 1], [], []>} : vector<336x32xbf16>, vector<32x256xbf16>, vector<336x256xf32> -> vector<336x256xf32>
    %c0_3 = arith.constant 0 : index
    %c0_4 = arith.constant 0 : index
    %3 = vector.load %arg3[%c0_3, %c0_4] : memref<1x256xf32, #tpu.memory_space<vmem>>, vector<1x256xf32>
    %4 = vector.broadcast %3 : vector<1x256xf32> to vector<336x256xf32>
    %5 = arith.addf %2, %4 : vector<336x256xf32>
    %6 = arith.truncf %5 : vector<336x256xf32> to vector<336x256xbf16>
    %c0_5 = arith.constant 0 : index
    %c0_6 = arith.constant 0 : index
    %7 = vector.load %arg4[%c0_5, %c0_6] : memref<336x256xbf16, #tpu.memory_space<vmem>>, vector<336x256xbf16>
    tpu.vector_store %arg4[%c0_5, %c0_6], %6 {strides = array<i32>} : memref<336x256xbf16, #tpu.memory_space<vmem>>, vector<336x256xbf16>,
    return
  }
  func.func @transform_0(%arg0: i32) -> (i32, i32) {
    %c0_i32 = arith.constant 0 : i32
    %c0_i32_0 = arith.constant 0 : i32
    return %arg0, %c0_i32 : i32, i32
  }
  func.func @transform_1(%arg0: i32) -> (i32, i32) {
    %c0_i32 = arith.constant 0 : i32
    %c0_i32_0 = arith.constant 0 : i32
    %c0_i32_1 = arith.constant 0 : i32
    return %c0_i32, %c0_i32_0 : i32, i32
  }
  func.func @transform_2(%arg0: i32) -> (i32, i32) {
    %c0_i32 = arith.constant 0 : i32
    %c0_i32_0 = arith.constant 0 : i32
    %c0_i32_1 = arith.constant 0 : i32
    return %c0_i32, %c0_i32_0 : i32, i32
  }
  func.func @transform_3(%arg0: i32) -> (i32, i32) {
    %c0_i32 = arith.constant 0 : i32
    %c0_i32_0 = arith.constant 0 : i32
    return %arg0, %c0_i32 : i32, i32
  }
}

</mosaic_0001>

<llo_original>
// kernel: tpu_custom_call.1
$region0: #{tpu_custom_call.1}
  #allocation0 [shape = 'u32[]', space=smem, size = 0x4, offset = 0x4, fixed_abs, tag = 'smem constant byte address 0x4 - core index']
  #allocation1 [shape = 'u32[144,128]{1,0:T(1,128)}', space=vmem, size = 0x12000, scoped, tag = 'internal scratch']
  %s0 = inlined_call_operand.vmem [shape: bf16[1332,32], index: 0, kind: input, shape index: {}]
  %s1 = inlined_call_operand.vmem [shape: bf16[32,256], index: 1, kind: input, shape index: {}]
  %s2 = inlined_call_operand.vmem [shape: f32[1,256], index: 2, kind: input, shape index: {}]
  %s3 = inlined_call_operand.hbm [shape: bf16[1332,256], index: 3, kind: output, shape index: {}]
  %s4 = sld [smem:[#allocation0]]
  $region45: #{tpu_custom_call.1} parent=0
    _
  %s6 = ssub.s32 1, %s4
  %s7 = scalar_select 0, %s6, %s4
  $region1: #{tpu_custom_call.1} parent=0
    #allocation2 [shape = 'u8[344064]{0}', space=vmem, size = 0x54000, scoped, tag = 'output window, operand 0']
    #allocation3 [shape = 's32[2]{0}', space=sflag, size = 0x8, scoped, tag = 'scoped memory for tpu_custom_call.1']
    %8 = vsyncpa [#allocation3], 0
    %s9 = scalar_lea.sflag [#allocation3], 1
    %10 = vsyncpa %s9, 0
    loop: start=0, step=1, limit=6
    $region2: #{tpu_custom_call.1} parent=1 // loop_pre_header
      _
    $region3: #{tpu_custom_call.1} parent=1 // loop_header
      %s12 = sphi 0, %s16
      %p13 = scmp.ge.s32.totalorder %s12, 6
      %s22 = sphi 0, %s24
      %s25 = sphi 0, %s22
      %s26 = sphi 0, %s25
      %s42 = sphi 0, %s26
      %s46 = sphi 0, %s46
      %s48 = sphi 0, %s46
      %s49 = sphi 0, %s48
      %s63 = sphi 0, %s49
      %s67 = sphi 0, %s67
      %s69 = sphi 0, %s67
      %s70 = sphi 0, %s69
      %s84 = sphi 0, %s70
      %s90 = sphi 0, %s92
      %s93 = sphi 0, %s90
      %s94 = sphi 0, %s93
      %s110 = sphi 0, %s94
    $region4: #{tpu_custom_call.1} parent=1 // loop_header_branch
      %15 = sbr.rel (%p13) target = $region8
    $region5: #{tpu_custom_call.1} parent=1 // loop_body
      %s17 = ssub.s32 %s12, 1
      %s18 = ssub.s32 %s12, 2
      %s19 = sadd.s32 %s12, 1
      %s20 = ssub.s32 %s12, %s19
      %p21 = scmp.eq.s32.totalorder %s20, 0
      %s23 = sadd.s32 %s22, 1
      %s24 = scalar_select %p21, %s22, %s23
      %p27 = pneg %p21
      %p28 = scmp.eq.s32.totalorder %s12, 3
      %p29 = por %p27, %p28
      %p30 = scmp.ne.s32.totalorder %s22, %s25
      %p31 = scmp.eq.s32.totalorder %s12, 0
      %p32 = por %p30, %p31
      %p33 = scmp.ne.s32.totalorder %s22, %s25
      %p34 = scmp.eq.s32.totalorder %s17, 3
      %p35 = por %p33, %p34
      %p36 = scmp.ne.s32.totalorder %s25, %s26
      %p37 = scmp.eq.s32.totalorder %s17, 0
      %p38 = por %p36, %p37
      %p39 = scmp.ne.s32.totalorder %s25, %s26
      %p40 = scmp.eq.s32.totalorder %s18, 3
      %p41 = por %p39, %p40
      %p43 = scmp.ne.s32.totalorder %s26, %s42
      %p44 = scmp.eq.s32.totalorder %s18, 0
      %p45 = por %p43, %p44
      %s47 = sadd.s32 %s46, 1
      %p50 = scmp.eq.s32.totalorder %s12, 3
      %p51 = scmp.ne.s32.totalorder %s46, %s48
      %p52 = scmp.eq.s32.totalorder %s12, 0
      %p53 = por %p51, %p52
      %p54 = scmp.ne.s32.totalorder %s46, %s48
      %p55 = scmp.eq.s32.totalorder %s17, 3
      %p56 = por %p54, %p55
      %p57 = scmp.ne.s32.totalorder %s48, %s49
      %p58 = scmp.eq.s32.totalorder %s17, 0
      %p59 = por %p57, %p58
      %p60 = scmp.ne.s32.totalorder %s48, %s49
      %p61 = scmp.eq.s32.totalorder %s18, 3
      %p62 = por %p60, %p61
      %p64 = scmp.ne.s32.totalorder %s49, %s63
      %p65 = scmp.eq.s32.totalorder %s18, 0
      %p66 = por %p64, %p65
      %s68 = sadd.s32 %s67, 1
      %p71 = scmp.eq.s32.totalorder %s12, 3
      %p72 = scmp.ne.s32.totalorder %s67, %s69
      %p73 = scmp.eq.s32.totalorder %s12, 0
      %p74 = por %p72, %p73
      %p75 = scmp.ne.s32.totalorder %s67, %s69
      %p76 = scmp.eq.s32.totalorder %s17, 3
      %p77 = por %p75, %p76
      %p78 = scmp.ne.s32.totalorder %s69, %s70
      %p79 = scmp.eq.s32.totalorder %s17, 0
      %p80 = por %p78, %p79
      %p81 = scmp.ne.s32.totalorder %s69, %s70
      %p82 = scmp.eq.s32.totalorder %s18, 3
      %p83 = por %p81, %p82
      %p85 = scmp.ne.s32.totalorder %s70, %s84
      %p86 = scmp.eq.s32.totalorder %s18, 0
      %p87 = por %p85, %p86
      %s88 = ssub.s32 %s12, %s19
      %p89 = scmp.eq.s32.totalorder %s88, 0
      %s91 = sadd.s32 %s90, 1
      %s92 = scalar_select %p89, %s90, %s91
      %p95 = pneg %p89
      %p96 = scmp.eq.s32.totalorder %s12, 3
      %p97 = por %p95, %p96
      %p98 = scmp.ne.s32.totalorder %s90, %s93
      %p99 = scmp.eq.s32.totalorder %s12, 0
      %p100 = por %p98, %p99
      %p101 = scmp.ne.s32.totalorder %s90, %s93
      %p102 = scmp.eq.s32.totalorder %s17, 3
      %p103 = por %p101, %p102
      %p104 = scmp.ne.s32.totalorder %s93, %s94
      %p105 = scmp.eq.s32.totalorder %s17, 0
      %p106 = por %p104, %p105
      %p107 = scmp.ne.s32.totalorder %s93, %s94
      %p108 = scmp.eq.s32.totalorder %s18, 3
      %p109 = por %p107, %p108
      %p111 = scmp.ne.s32.totalorder %s94, %s110
      %p112 = scmp.eq.s32.totalorder %s18, 0
      %p113 = por %p111, %p112
      %p114 = scmp.le.s32.totalorder 1, %s12
      %p115 = scmp.lt.s32.totalorder %s12, 5
      %p116 = pnand %p114, %p115
      %p117 = pneg %p116
      // Predicated region
      $region9: #{tpu_custom_call.1} parent=5 // pred_check
        _
      $region10: #{tpu_custom_call.1} parent=5 // pred_check_branch
        %119 = sbr.rel (%p116) target = $region12
      $region11: #{tpu_custom_call.1} parent=5 // pred_region
        %s120 = ssub.s32 %s12, 1
        // Predicated region
        $region13: #{tpu_custom_call.1} parent=11 // pred_check
          %p121 = pneg %p59
        $region14: #{tpu_custom_call.1} parent=11 // pred_check_branch
          %123 = sbr.rel (%p121) target = $region16
        $region15: #{tpu_custom_call.1} parent=11 // pred_region
          _
        $region16: #{tpu_custom_call.1} parent=11 // pred_fallthru
          _
        // Predicated region
        $region17: #{tpu_custom_call.1} parent=11 // pred_check
          %p124 = pneg %p80
        $region18: #{tpu_custom_call.1} parent=11 // pred_check_branch
          %126 = sbr.rel (%p124) target = $region20
        $region19: #{tpu_custom_call.1} parent=11 // pred_region
          _
        $region20: #{tpu_custom_call.1} parent=11 // pred_fallthru
          _
      $region12: #{tpu_custom_call.1} parent=5 // pred_fallthru
        _
      %p127 = scmp.lt.s32.totalorder %s12, 4
      // Predicated region
      $region21: #{tpu_custom_call.1} parent=5 // pred_check
        %p128 = pneg %p127
      $region22: #{tpu_custom_call.1} parent=5 // pred_check_branch
        %130 = sbr.rel (%p128) target = $region24
      $region23: #{tpu_custom_call.1} parent=5 // pred_region
        // Predicated region
        $region25: #{tpu_custom_call.1} parent=23 // pred_check
          %p131 = pneg %p32
        $region26: #{tpu_custom_call.1} parent=23 // pred_check_branch
          %133 = sbr.rel (%p131) target = $region28
        $region27: #{tpu_custom_call.1} parent=23 // pred_region
          %s134 = smul.u32 42, %s12
          %s135 = ssub.s32 167, %s134
          %p136 = scmp.lt.s32.totalorder %s135, 42
          %s137 = scalar_select %p136, %s135, 42
          %s138 = smul.u32 64, %s137
          %p139 = scmp.lt.s32.totalorder %s134, 166
          %s140 = scalar_select %p139, %s134, 166
          %s141 = smul.addr %s140, 4
          %s142 = scalar_lea.vmem %s0, %s141
          %s143 = smul.u32 42, %s12
          %s144 = ssub.s32 167, %s143
          %p145 = scmp.lt.s32.totalorder %s144, 42
          %s146 = scalar_select %p145, %s144, 42
          %s147 = smul.u32 64, %s146
        $region28: #{tpu_custom_call.1} parent=23 // pred_fallthru
          _
      $region24: #{tpu_custom_call.1} parent=5 // pred_fallthru
        _
      %p148 = scmp.le.s32.totalorder 1, %s12
      %p149 = scmp.lt.s32.totalorder %s12, 5
      %p150 = pnand %p148, %p149
      %p151 = pneg %p150
      // Predicated region
      $region29: #{tpu_custom_call.1} parent=5 // pred_check
        _
      $region30: #{tpu_custom_call.1} parent=5 // pred_check_branch
        %153 = sbr.rel (%p150) target = $region32
      $region31: #{tpu_custom_call.1} parent=5 // pred_region
        %s154 = ssub.s32 %s12, 1
        %s155 = smul.u32 42, %s17
        %s156 = ssub.s32 167, %s155
        %p157 = scmp.lt.s32.totalorder %s156, 42
        %s158 = scalar_select %p157, %s156, 42
        %s159 = smul.u32 64, %s158
        %p160 = scmp.lt.s32.totalorder %s155, 166
        %s161 = scalar_select %p160, %s155, 166
        %s162 = smul.addr %s161, 4
        %s163 = scalar_lea.vmem %s0, %s162
        %p164 = pneg %p38
        %p165 = pneg %p35
        %p166 = pneg %p59
        %p167 = pneg %p56
        %p168 = pneg %p80
        %p169 = pneg %p77
        %p170 = pneg %p106
        %p171 = pneg %p103
        %s172 = sand.u32 %s93, 1
        %s173 = scalar_lea.sflag [#allocation3], %s172
        %s174 = sand.u32 %s93, 1
        %s175 = smul.addr %s174, 336
        %s176 = scalar_lea.vmem [#allocation2], %s175
        %s177 = smul.u32 42, %s17
        %s178 = ssub.s32 167, %s177
        %p179 = scmp.lt.s32.totalorder %s178, 42
        %s180 = scalar_select %p179, %s178, 42
        %s181 = smul.u32 64, %s180
        %p182 = scmp.lt.s32.totalorder %s177, 166
        %s183 = scalar_select %p182, %s177, 166
        %s184 = smul.addr %s183, 4
        %s185 = scalar_lea.vmem %s0, %s184
        %s186 = smul.u32 42, %s17
        %s187 = ssub.s32 167, %s186
        %p188 = scmp.lt.s32.totalorder %s187, 42
        %s189 = scalar_select %p188, %s187, 42
        %s190 = smul.u32 64, %s189
        %s191 = smul.u32 42, %s17
        %s192 = ssub.s32 167, %s191
        %p193 = scmp.lt.s32.totalorder %s192, 42
        %s194 = scalar_select %p193, %s192, 42
        %s195 = smul.u32 64, %s194
        %s196 = smul.u32 %s195, 2
        %v198 = vld [vmem:[%s185] sm:$0xf]
        %v199 = vld [vmem:[%s185 + $0x4] sm:$0xf]
        %v200 = vld [vmem:[%s185 + $0x8] sm:$0xf]
        %v201 = vld [vmem:[%s185 + $0xc] sm:$0xf]
        %v202 = vld [vmem:[%s185 + $0x10] sm:$0xf]
        %v203 = vld [vmem:[%s185 + $0x14] sm:$0xf]
        %v204 = vld [vmem:[%s185 + $0x18] sm:$0xf]
        %v205 = vld [vmem:[%s185 + $0x1c] sm:$0xf]
        %v206 = vld [vmem:[%s185 + $0x20] sm:$0xf]
        %v207 = vld [vmem:[%s185 + $0x24] sm:$0xf]
        %v208 = vld [vmem:[%s185 + $0x28] sm:$0xf]
        %v209 = vld [vmem:[%s185 + $0x2c] sm:$0xf]
        %v210 = vld [vmem:[%s185 + $0x30] sm:$0xf]
        %v211 = vld [vmem:[%s185 + $0x34] sm:$0xf]
        %v212 = vld [vmem:[%s185 + $0x38] sm:$0xf]
        %v213 = vld [vmem:[%s185 + $0x3c] sm:$0xf]
        %v214 = vld [vmem:[%s185 + $0x40] sm:$0xf]
        %v215 = vld [vmem:[%s185 + $0x44] sm:$0xf]
        %v216 = vld [vmem:[%s185 + $0x48] sm:$0xf]
        %v217 = vld [vmem:[%s185 + $0x4c] sm:$0xf]
        %v218 = vld [vmem:[%s185 + $0x50] sm:$0xf]
        %v219 = vld [vmem:[%s185 + $0x54] sm:$0xf]
        %v220 = vld [vmem:[%s185 + $0x58] sm:$0xf]
        %v221 = vld [vmem:[%s185 + $0x5c] sm:$0xf]
        %v222 = vld [vmem:[%s185 + $0x60] sm:$0xf]
        %v223 = vld [vmem:[%s185 + $0x64] sm:$0xf]
        %v224 = vld [vmem:[%s185 + $0x68] sm:$0xf]
        %v225 = vld [vmem:[%s185 + $0x6c] sm:$0xf]
        %v226 = vld [vmem:[%s185 + $0x70] sm:$0xf]
        %v227 = vld [vmem:[%s185 + $0x74] sm:$0xf]
        %v228 = vld [vmem:[%s185 + $0x78] sm:$0xf]
        %v229 = vld [vmem:[%s185 + $0x7c] sm:$0xf]
        %v230 = vld [vmem:[%s185 + $0x80] sm:$0xf]
        %v231 = vld [vmem:[%s185 + $0x84] sm:$0xf]
        %v232 = vld [vmem:[%s185 + $0x88] sm:$0xf]
        %v233 = vld [vmem:[%s185 + $0x8c] sm:$0xf]
        %v234 = vld [vmem:[%s185 + $0x90] sm:$0xf]
        %v235 = vld [vmem:[%s185 + $0x94] sm:$0xf]
        %v236 = vld [vmem:[%s185 + $0x98] sm:$0xf]
        %v237 = vld [vmem:[%s185 + $0x9c] sm:$0xf]
        %v238 = vld [vmem:[%s185 + $0xa0] sm:$0xf]
        %v239 = vld [vmem:[%s185 + $0xa4] sm:$0xf]
        %v240 = vld [vmem:[%s1] sm:$0xff]
        %v241 = vld [vmem:[%s1 + $0x8] sm:$0xff]
        %v242 = vld [vmem:[%s1 + $0x10] sm:$0xff]
        %v243 = vld [vmem:[%s1 + $0x18] sm:$0xff]
        %v244 = vld [vmem:[%s2] sm:$0x3]
        %v246 = vlaneseq
        %v247 = vshrl.u32 %v246, 7
        %v248 = vsub.s32 0, %v247
        %v249 = vrot.slane %v244, %v248
        %v250 = vlaneseq
        %v251 = vshrl.u32 %v250, 7
        %v252 = vsub.s32 1, %v251
        %v253 = vrot.slane %v244, %v252
        %v298 = vunpack.c.l.b16 %v198
        %v299 = vunpack.c.l.b16 %v199
        %v300 = vunpack.c.l.b16 %v200
        %v301 = vunpack.c.l.b16 %v201
        %v302 = vunpack.c.l.b16 %v202
        %v303 = vunpack.c.l.b16 %v203
        %v304 = vunpack.c.l.b16 %v204
        %v305 = vunpack.c.l.b16 %v205
        %v306 = vunpack.c.l.b16 %v206
        %v307 = vunpack.c.l.b16 %v207
        %v308 = vunpack.c.l.b16 %v208
        %v309 = vunpack.c.l.b16 %v209
        %v310 = vunpack.c.l.b16 %v210
        %v311 = vunpack.c.l.b16 %v211
        %v312 = vunpack.c.l.b16 %v212
        %v313 = vunpack.c.l.b16 %v213
        %v314 = vunpack.c.l.b16 %v214
        %v315 = vunpack.c.l.b16 %v215
        %v316 = vunpack.c.l.b16 %v216
        %v317 = vunpack.c.l.b16 %v217
        %v318 = vunpack.c.l.b16 %v218
        %v319 = vunpack.c.l.b16 %v219
        %v320 = vunpack.c.l.b16 %v220
        %v321 = vunpack.c.l.b16 %v221
        %v322 = vunpack.c.l.b16 %v222
        %v323 = vunpack.c.l.b16 %v223
        %v324 = vunpack.c.l.b16 %v224
        %v325 = vunpack.c.l.b16 %v225
        %v326 = vunpack.c.l.b16 %v226
        %v327 = vunpack.c.l.b16 %v227
        %v328 = vunpack.c.l.b16 %v228
        %v329 = vunpack.c.l.b16 %v229
        %v330 = vunpack.c.l.b16 %v230
        %v331 = vunpack.c.l.b16 %v231
        %v332 = vunpack.c.l.b16 %v232
        %v333 = vunpack.c.l.b16 %v233
        %v334 = vunpack.c.l.b16 %v234
        %v335 = vunpack.c.l.b16 %v235
        %v336 = vunpack.c.l.b16 %v236
        %v337 = vunpack.c.l.b16 %v237
        %v338 = vunpack.c.l.b16 %v238
        %v339 = vunpack.c.l.b16 %v239
        %v340 = vpack.c.b16 %v299, %v298
        %v341 = vpack.c.b16 %v301, %v300
        %v342 = vpack.c.b16 %v303, %v302
        %v343 = vpack.c.b16 %v305, %v304
        %v344 = vpack.c.b16 %v307, %v306
        %v345 = vpack.c.b16 %v309, %v308
        %v346 = vpack.c.b16 %v311, %v310
        %v347 = vpack.c.b16 %v313, %v312
        %v348 = vpack.c.b16 %v315, %v314
        %v349 = vpack.c.b16 %v317, %v316
        %v350 = vpack.c.b16 %v319, %v318
        %v351 = vpack.c.b16 %v321, %v320
        %v352 = vpack.c.b16 %v323, %v322
        %v353 = vpack.c.b16 %v325, %v324
        %v354 = vpack.c.b16 %v327, %v326
        %v355 = vpack.c.b16 %v329, %v328
        %v356 = vpack.c.b16 %v331, %v330
        %v357 = vpack.c.b16 %v333, %v332
        %v358 = vpack.c.b16 %v335, %v334
        %v359 = vpack.c.b16 %v337, %v336
        %v360 = vpack.c.b16 %v339, %v338
        %v365 = vunpack.c.l.b16 %v240
        %v366 = vunpack.c.h.b16 %v240
        %v367 = vunpack.c.l.b16 %v241
        %v368 = vunpack.c.h.b16 %v241
        %v369 = vunpack.c.l.b16 %v242
        %v370 = vunpack.c.h.b16 %v242
        %v371 = vunpack.c.l.b16 %v243
        %v372 = vunpack.c.h.b16 %v243
        %v373 = vpack.c.b16 %v367, %v365
        %v374 = vpack.c.b16 %v368, %v366
        %v375 = vpack.c.b16 %v371, %v369
        %v376 = vpack.c.b16 %v372, %v370
        %vm381 = vcmask 261120
        %v383 = vsel %vm381, %v340, 0
        %v386 = vsel %vm381, %v341, 0
        %v389 = vsel %vm381, %v342, 0
        %v392 = vsel %vm381, %v343, 0
        %v395 = vsel %vm381, %v344, 0
        %v398 = vsel %vm381, %v345, 0
        %v401 = vsel %vm381, %v346, 0
        %v404 = vsel %vm381, %v347, 0
        %v407 = vsel %vm381, %v348, 0
        %v410 = vsel %vm381, %v349, 0
        %v413 = vsel %vm381, %v350, 0
        %v416 = vsel %vm381, %v351, 0
        %v419 = vsel %vm381, %v352, 0
        %v422 = vsel %vm381, %v353, 0
        %v425 = vsel %vm381, %v354, 0
        %v428 = vsel %vm381, %v355, 0
        %v431 = vsel %vm381, %v356, 0
        %v434 = vsel %vm381, %v357, 0
        %v437 = vsel %vm381, %v358, 0
        %v440 = vsel %vm381, %v359, 0
        %v443 = vsel %vm381, %v360, 0
        %445 = vmatprep.subr.bf16.mxu0 %v374
        %446 = vmatpush1.bf16.msra.mxu0 %v373
        %447 = vmatprep.subr.bf16.mxu0 %v376
        %448 = vmatpush1.bf16.msra.mxu0 %v375
        %449 = vmatprep.subr.bf16.mxu0 0
        %450 = vmatpush1.bf16.msra.mxu0 0
        %451 = vmatprep.subr.bf16.mxu0 0
        %452 = vmatpush1.bf16.msra.mxu0 0
        %453 = vmatprep.subr.bf16.mxu0 0
        %454 = vmatpush1.bf16.msra.mxu0 0
        %455 = vmatprep.subr.bf16.mxu0 0
        %456 = vmatpush1.bf16.msra.mxu0 0
        %457 = vmatprep.subr.bf16.mxu0 0
        %458 = vmatpush1.bf16.msra.mxu0 0
        %459 = vmatprep.subr.bf16.mxu0 0
        %460 = vmatpush1.bf16.msra.mxu0 0
        %461 = vmatprep.subr.bf16.mxu0 0
        %462 = vmatpush1.bf16.msra.mxu0 0
        %463 = vmatprep.subr.bf16.mxu0 0
        %464 = vmatpush1.bf16.msra.mxu0 0
        %465 = vmatprep.subr.bf16.mxu0 0
        %466 = vmatpush1.bf16.msra.mxu0 0
        %467 = vmatprep.subr.bf16.mxu0 0
        %468 = vmatpush1.bf16.msra.mxu0 0
        %469 = vmatprep.subr.bf16.mxu0 0
        %470 = vmatpush1.bf16.msra.mxu0 0
        %471 = vmatprep.subr.bf16.mxu0 0
        %472 = vmatpush1.bf16.msra.mxu0 0
        %473 = vmatprep.subr.bf16.mxu0 0
        %474 = vmatpush1.bf16.msra.mxu0 0
        %475 = vmatprep.subr.bf16.mxu0 0
        %476 = vmatpush1.bf16.msra.mxu0 0
        %477 = vmatprep.mubr.bf16.mxu0 0
        %478 = vmatmul.mubr.bf16.gmra.mrb[0].mxu0 %v383
        %v479 = vpop.f32.mrb[0].mxu0
        %v480 = vadd.f32 %v249, %v479
        %v481 = vpop.f32.mrb[0].mxu0
        %v482 = vadd.f32 %v253, %v481
        %v483 = vpop.f32.mrb[0].mxu0
        %v484 = vadd.f32 %v249, %v483
        %v485 = vpop.f32.mrb[0].mxu0
        %v486 = vadd.f32 %v253, %v485
        %487 = vmatprep.mubr.bf16.mxu0 0
        %488 = vmatmul.mubr.bf16.gmra.mrb[0].mxu0 %v386
        %v489 = vpop.f32.mrb[0].mxu0
        %v490 = vadd.f32 %v249, %v489
        %v491 = vpop.f32.mrb[0].mxu0
        %v492 = vadd.f32 %v253, %v491
        %v493 = vpop.f32.mrb[0].mxu0
        %v494 = vadd.f32 %v249, %v493
        %v495 = vpop.f32.mrb[0].mxu0
        %v496 = vadd.f32 %v253, %v495
        %497 = vmatprep.mubr.bf16.mxu0 0
        %498 = vmatmul.mubr.bf16.gmra.mrb[0].mxu0 %v389
        %v499 = vpop.f32.mrb[0].mxu0
        %v500 = vadd.f32 %v249, %v499
        %v501 = vpop.f32.mrb[0].mxu0
        %v502 = vadd.f32 %v253, %v501
        %v503 = vpop.f32.mrb[0].mxu0
        %v504 = vadd.f32 %v249, %v503
        %v505 = vpop.f32.mrb[0].mxu0
        %v506 = vadd.f32 %v253, %v505
        %507 = vmatprep.mubr.bf16.mxu0 0
        %508 = vmatmul.mubr.bf16.gmra.mrb[0].mxu0 %v392
        %v509 = vpop.f32.mrb[0].mxu0
        %v510 = vadd.f32 %v249, %v509
        %v511 = vpop.f32.mrb[0].mxu0
        %v512 = vadd.f32 %v253, %v511
        %v513 = vpop.f32.mrb[0].mxu0
        %v514 = vadd.f32 %v249, %v513
        %v515 = vpop.f32.mrb[0].mxu0
        %v516 = vadd.f32 %v253, %v515
        %517 = vmatprep.mubr.bf16.mxu0 0
        %518 = vmatmul.mubr.bf16.gmra.mrb[0].mxu0 %v395
        %v519 = vpop.f32.mrb[0].mxu0
        %v520 = vadd.f32 %v249, %v519
        %v521 = vpop.f32.mrb[0].mxu0
        %v522 = vadd.f32 %v253, %v521
        %v523 = vpop.f32.mrb[0].mxu0
        %v524 = vadd.f32 %v249, %v523
        %v525 = vpop.f32.mrb[0].mxu0
        %v526 = vadd.f32 %v253, %v525
        %527 = vmatprep.mubr.bf16.mxu0 0
        %528 = vmatmul.mubr.bf16.gmra.mrb[0].mxu0 %v398
        %v529 = vpop.f32.mrb[0].mxu0
        %v530 = vadd.f32 %v249, %v529
        %v531 = vpop.f32.mrb[0].mxu0
        %v532 = vadd.f32 %v253, %v531
        %v533 = vpop.f32.mrb[0].mxu0
        %v534 = vadd.f32 %v249, %v533
        %v535 = vpop.f32.mrb[0].mxu0
        %v536 = vadd.f32 %v253, %v535
        %537 = vmatprep.mubr.bf16.mxu0 0
        %538 = vmatmul.mubr.bf16.gmra.mrb[0].mxu0 %v401
        %v539 = vpop.f32.mrb[0].mxu0
        %v540 = vadd.f32 %v249, %v539
        %v541 = vpop.f32.mrb[0].mxu0
        %v542 = vadd.f32 %v253, %v541
        %v543 = vpop.f32.mrb[0].mxu0
        %v544 = vadd.f32 %v249, %v543
        %v545 = vpop.f32.mrb[0].mxu0
        %v546 = vadd.f32 %v253, %v545
        %547 = vmatprep.mubr.bf16.mxu0 0
        %548 = vmatmul.mubr.bf16.gmra.mrb[0].mxu0 %v404
        %v549 = vpop.f32.mrb[0].mxu0
        %v550 = vadd.f32 %v249, %v549
        %v551 = vpop.f32.mrb[0].mxu0
        %v552 = vadd.f32 %v253, %v551
        %v553 = vpop.f32.mrb[0].mxu0
        %v554 = vadd.f32 %v249, %v553
        %v555 = vpop.f32.mrb[0].mxu0
        %v556 = vadd.f32 %v253, %v555
        %557 = vmatprep.mubr.bf16.mxu0 0
        %558 = vmatmul.mubr.bf16.gmra.mrb[0].mxu0 %v407
        %v559 = vpop.f32.mrb[0].mxu0
        %v560 = vadd.f32 %v249, %v559
        %v561 = vpop.f32.mrb[0].mxu0
        %v562 = vadd.f32 %v253, %v561
        %v563 = vpop.f32.mrb[0].mxu0
        %v564 = vadd.f32 %v249, %v563
        %v565 = vpop.f32.mrb[0].mxu0
        %v566 = vadd.f32 %v253, %v565
        %567 = vmatprep.mubr.bf16.mxu0 0
        %568 = vmatmul.mubr.bf16.gmra.mrb[0].mxu0 %v410
        %v569 = vpop.f32.mrb[0].mxu0
        %v570 = vadd.f32 %v249, %v569
        %v571 = vpop.f32.mrb[0].mxu0
        %v572 = vadd.f32 %v253, %v571
        %v573 = vpop.f32.mrb[0].mxu0
        %v574 = vadd.f32 %v249, %v573
        %v575 = vpop.f32.mrb[0].mxu0
        %v576 = vadd.f32 %v253, %v575
        %577 = vmatprep.mubr.bf16.mxu0 0
        %578 = vmatmul.mubr.bf16.gmra.mrb[0].mxu0 %v413
        %v579 = vpop.f32.mrb[0].mxu0
        %v580 = vadd.f32 %v249, %v579
        %v581 = vpop.f32.mrb[0].mxu0
        %v582 = vadd.f32 %v253, %v581
        %v583 = vpop.f32.mrb[0].mxu0
        %v584 = vadd.f32 %v249, %v583
        %v585 = vpop.f32.mrb[0].mxu0
        %v586 = vadd.f32 %v253, %v585
        %587 = vmatprep.mubr.bf16.mxu0 0
        %588 = vmatmul.mubr.bf16.gmra.mrb[0].mxu0 %v416
        %v589 = vpop.f32.mrb[0].mxu0
        %v590 = vadd.f32 %v249, %v589
        %v591 = vpop.f32.mrb[0].mxu0
        %v592 = vadd.f32 %v253, %v591
        %v593 = vpop.f32.mrb[0].mxu0
        %v594 = vadd.f32 %v249, %v593
        %v595 = vpop.f32.mrb[0].mxu0
        %v596 = vadd.f32 %v253, %v595
        %597 = vmatprep.mubr.bf16.mxu0 0
        %598 = vmatmul.mubr.bf16.gmra.mrb[0].mxu0 %v419
        %v599 = vpop.f32.mrb[0].mxu0
        %v600 = vadd.f32 %v249, %v599
        %v601 = vpop.f32.mrb[0].mxu0
        %v602 = vadd.f32 %v253, %v601
        %v603 = vpop.f32.mrb[0].mxu0
        %v604 = vadd.f32 %v249, %v603
        %v605 = vpop.f32.mrb[0].mxu0
        %v606 = vadd.f32 %v253, %v605
        %607 = vmatprep.mubr.bf16.mxu0 0
        %608 = vmatmul.mubr.bf16.gmra.mrb[0].mxu0 %v422
        %v609 = vpop.f32.mrb[0].mxu0
        %v610 = vadd.f32 %v249, %v609
        %v611 = vpop.f32.mrb[0].mxu0
        %v612 = vadd.f32 %v253, %v611
        %v613 = vpop.f32.mrb[0].mxu0
        %v614 = vadd.f32 %v249, %v613
        %v615 = vpop.f32.mrb[0].mxu0
        %v616 = vadd.f32 %v253, %v615
        %617 = vmatprep.mubr.bf16.mxu0 0
        %618 = vmatmul.mubr.bf16.gmra.mrb[0].mxu0 %v425
        %v619 = vpop.f32.mrb[0].mxu0
        %v620 = vadd.f32 %v249, %v619
        %v621 = vpop.f32.mrb[0].mxu0
        %v622 = vadd.f32 %v253, %v621
        %v623 = vpop.f32.mrb[0].mxu0
        %v624 = vadd.f32 %v249, %v623
        %v625 = vpop.f32.mrb[0].mxu0
        %v626 = vadd.f32 %v253, %v625
        %627 = vmatprep.mubr.bf16.mxu0 0
        %628 = vmatmul.mubr.bf16.gmra.mrb[0].mxu0 %v428
        %v629 = vpop.f32.mrb[0].mxu0
        %v630 = vadd.f32 %v249, %v629
        %v631 = vpop.f32.mrb[0].mxu0
        %v632 = vadd.f32 %v253, %v631
        %v633 = vpop.f32.mrb[0].mxu0
        %v634 = vadd.f32 %v249, %v633
        %v635 = vpop.f32.mrb[0].mxu0
        %v636 = vadd.f32 %v253, %v635
        %637 = vmatprep.mubr.bf16.mxu0 0
        %638 = vmatmul.mubr.bf16.gmra.mrb[0].mxu0 %v431
        %v639 = vpop.f32.mrb[0].mxu0
        %v640 = vadd.f32 %v249, %v639
        %v641 = vpop.f32.mrb[0].mxu0
        %v642 = vadd.f32 %v253, %v641
        %v643 = vpop.f32.mrb[0].mxu0
        %v644 = vadd.f32 %v249, %v643
        %v645 = vpop.f32.mrb[0].mxu0
        %v646 = vadd.f32 %v253, %v645
        %647 = vmatprep.mubr.bf16.mxu0 0
        %648 = vmatmul.mubr.bf16.gmra.mrb[0].mxu0 %v434
        %v649 = vpop.f32.mrb[0].mxu0
        %v650 = vadd.f32 %v249, %v649
        %v651 = vpop.f32.mrb[0].mxu0
        %v652 = vadd.f32 %v253, %v651
        %v653 = vpop.f32.mrb[0].mxu0
        %v654 = vadd.f32 %v249, %v653
        %v655 = vpop.f32.mrb[0].mxu0
        %v656 = vadd.f32 %v253, %v655
        %657 = vmatprep.mubr.bf16.mxu0 0
        %658 = vmatmul.mubr.bf16.gmra.mrb[0].mxu0 %v437
        %v659 = vpop.f32.mrb[0].mxu0
        %v660 = vadd.f32 %v249, %v659
        %v661 = vpop.f32.mrb[0].mxu0
        %v662 = vadd.f32 %v253, %v661
        %v663 = vpop.f32.mrb[0].mxu0
        %v664 = vadd.f32 %v249, %v663
        %v665 = vpop.f32.mrb[0].mxu0
        %v666 = vadd.f32 %v253, %v665
        %667 = vmatprep.mubr.bf16.mxu0 0
        %668 = vmatmul.mubr.bf16.gmra.mrb[0].mxu0 %v440
        %v669 = vpop.f32.mrb[0].mxu0
        %v670 = vadd.f32 %v249, %v669
        %v671 = vpop.f32.mrb[0].mxu0
        %v672 = vadd.f32 %v253, %v671
        %v673 = vpop.f32.mrb[0].mxu0
        %v674 = vadd.f32 %v249, %v673
        %v675 = vpop.f32.mrb[0].mxu0
        %v676 = vadd.f32 %v253, %v675
        %677 = vmatprep.mubr.bf16.mxu0 0
        %678 = vmatmul.mubr.bf16.gmra.mrb[0].mxu0 %v443
        %v679 = vpop.f32.mrb[0].mxu0
        %v680 = vadd.f32 %v249, %v679
        %v681 = vpop.f32.mrb[0].mxu0
        %v682 = vadd.f32 %v253, %v681
        %v683 = vpop.f32.mrb[0].mxu0
        %v684 = vadd.f32 %v249, %v683
        %v685 = vpop.f32.mrb[0].mxu0
        %v686 = vadd.f32 %v253, %v685
        %687 = vdwg.mxu0
        %v688 = vpack.c.bf16 %v484, %v480
        %v689 = vpack.c.bf16 %v486, %v482
        %v690 = vpack.c.bf16 %v494, %v490
        %v691 = vpack.c.bf16 %v496, %v492
        %v692 = vpack.c.bf16 %v504, %v500
        %v693 = vpack.c.bf16 %v506, %v502
        %v694 = vpack.c.bf16 %v514, %v510
        %v695 = vpack.c.bf16 %v516, %v512
        %v696 = vpack.c.bf16 %v524, %v520
        %v697 = vpack.c.bf16 %v526, %v522
        %v698 = vpack.c.bf16 %v534, %v530
        %v699 = vpack.c.bf16 %v536, %v532
        %v700 = vpack.c.bf16 %v544, %v540
        %v701 = vpack.c.bf16 %v546, %v542
        %v702 = vpack.c.bf16 %v554, %v550
        %v703 = vpack.c.bf16 %v556, %v552
        %v704 = vpack.c.bf16 %v564, %v560
        %v705 = vpack.c.bf16 %v566, %v562
        %v706 = vpack.c.bf16 %v574, %v570
        %v707 = vpack.c.bf16 %v576, %v572
        %v708 = vpack.c.bf16 %v584, %v580
        %v709 = vpack.c.bf16 %v586, %v582
        %v710 = vpack.c.bf16 %v594, %v590
        %v711 = vpack.c.bf16 %v596, %v592
        %v712 = vpack.c.bf16 %v604, %v600
        %v713 = vpack.c.bf16 %v606, %v602
        %v714 = vpack.c.bf16 %v614, %v610
        %v715 = vpack.c.bf16 %v616, %v612
        %v716 = vpack.c.bf16 %v624, %v620
        %v717 = vpack.c.bf16 %v626, %v622
        %v718 = vpack.c.bf16 %v634, %v630
        %v719 = vpack.c.bf16 %v636, %v632
        %v720 = vpack.c.bf16 %v644, %v640
        %v721 = vpack.c.bf16 %v646, %v642
        %v722 = vpack.c.bf16 %v654, %v650
        %v723 = vpack.c.bf16 %v656, %v652
        %v724 = vpack.c.bf16 %v664, %v660
        %v725 = vpack.c.bf16 %v666, %v662
        %v726 = vpack.c.bf16 %v674, %v670
        %v727 = vpack.c.bf16 %v676, %v672
        %v728 = vpack.c.bf16 %v684, %v680
        %v729 = vpack.c.bf16 %v686, %v682
        %v772 = vunpack.c.l.b16 %v688
        %v773 = vunpack.c.l.b16 %v689
        %v774 = vunpack.c.h.b16 %v688
        %v775 = vunpack.c.h.b16 %v689
        %v776 = vunpack.c.l.b16 %v690
        %v777 = vunpack.c.l.b16 %v691
        %v778 = vunpack.c.h.b16 %v690
        %v779 = vunpack.c.h.b16 %v691
        %v780 = vunpack.c.l.b16 %v692
        %v781 = vunpack.c.l.b16 %v693
        %v782 = vunpack.c.h.b16 %v692
        %v783 = vunpack.c.h.b16 %v693
        %v784 = vunpack.c.l.b16 %v694
        %v785 = vunpack.c.l.b16 %v695
        %v786 = vunpack.c.h.b16 %v694
        %v787 = vunpack.c.h.b16 %v695
        %v788 = vunpack.c.l.b16 %v696
        %v789 = vunpack.c.l.b16 %v697
        %v790 = vunpack.c.h.b16 %v696
        %v791 = vunpack.c.h.b16 %v697
        %v792 = vunpack.c.l.b16 %v698
        %v793 = vunpack.c.l.b16 %v699
        %v794 = vunpack.c.h.b16 %v698
        %v795 = vunpack.c.h.b16 %v699
        %v796 = vunpack.c.l.b16 %v700
        %v797 = vunpack.c.l.b16 %v701
        %v798 = vunpack.c.h.b16 %v700
        %v799 = vunpack.c.h.b16 %v701
        %v800 = vunpack.c.l.b16 %v702
        %v801 = vunpack.c.l.b16 %v703
        %v802 = vunpack.c.h.b16 %v702
        %v803 = vunpack.c.h.b16 %v703
        %v804 = vunpack.c.l.b16 %v704
        %v805 = vunpack.c.l.b16 %v705
        %v806 = vunpack.c.h.b16 %v704
        %v807 = vunpack.c.h.b16 %v705
        %v808 = vunpack.c.l.b16 %v706
        %v809 = vunpack.c.l.b16 %v707
        %v810 = vunpack.c.h.b16 %v706
        %v811 = vunpack.c.h.b16 %v707
        %v812 = vunpack.c.l.b16 %v708
        %v813 = vunpack.c.l.b16 %v709
        %v814 = vunpack.c.h.b16 %v708
        %v815 = vunpack.c.h.b16 %v709
        %v816 = vunpack.c.l.b16 %v710
        %v817 = vunpack.c.l.b16 %v711
        %v818 = vunpack.c.h.b16 %v710
        %v819 = vunpack.c.h.b16 %v711
        %v820 = vunpack.c.l.b16 %v712
        %v821 = vunpack.c.l.b16 %v713
        %v822 = vunpack.c.h.b16 %v712
        %v823 = vunpack.c.h.b16 %v713
        %v824 = vunpack.c.l.b16 %v714
        %v825 = vunpack.c.l.b16 %v715
        %v826 = vunpack.c.h.b16 %v714
        %v827 = vunpack.c.h.b16 %v715
        %v828 = vunpack.c.l.b16 %v716
        %v829 = vunpack.c.l.b16 %v717
        %v830 = vunpack.c.h.b16 %v716
        %v831 = vunpack.c.h.b16 %v717
        %v832 = vunpack.c.l.b16 %v718
        %v833 = vunpack.c.l.b16 %v719
        %v834 = vunpack.c.h.b16 %v718
        %v835 = vunpack.c.h.b16 %v719
        %v836 = vunpack.c.l.b16 %v720
        %v837 = vunpack.c.l.b16 %v721
        %v838 = vunpack.c.h.b16 %v720
        %v839 = vunpack.c.h.b16 %v721
        %v840 = vunpack.c.l.b16 %v722
        %v841 = vunpack.c.l.b16 %v723
        %v842 = vunpack.c.h.b16 %v722
        %v843 = vunpack.c.h.b16 %v723
        %v844 = vunpack.c.l.b16 %v724
        %v845 = vunpack.c.l.b16 %v725
        %v846 = vunpack.c.h.b16 %v724
        %v847 = vunpack.c.h.b16 %v725
        %v848 = vunpack.c.l.b16 %v726
        %v849 = vunpack.c.l.b16 %v727
        %v850 = vunpack.c.h.b16 %v726
        %v851 = vunpack.c.h.b16 %v727
        %v852 = vunpack.c.l.b16 %v728
        %v853 = vunpack.c.l.b16 %v729
        %v854 = vunpack.c.h.b16 %v728
        %v855 = vunpack.c.h.b16 %v729
        %v856 = vpack.c.b16 %v773, %v772
        %v857 = vpack.c.b16 %v775, %v774
        %v858 = vpack.c.b16 %v777, %v776
        %v859 = vpack.c.b16 %v779, %v778
        %v860 = vpack.c.b16 %v781, %v780
        %v861 = vpack.c.b16 %v783, %v782
        %v862 = vpack.c.b16 %v785, %v784
        %v863 = vpack.c.b16 %v787, %v786
        %v864 = vpack.c.b16 %v789, %v788
        %v865 = vpack.c.b16 %v791, %v790
        %v866 = vpack.c.b16 %v793, %v792
        %v867 = vpack.c.b16 %v795, %v794
        %v868 = vpack.c.b16 %v797, %v796
        %v869 = vpack.c.b16 %v799, %v798
        %v870 = vpack.c.b16 %v801, %v800
        %v871 = vpack.c.b16 %v803, %v802
        %v872 = vpack.c.b16 %v805, %v804
        %v873 = vpack.c.b16 %v807, %v806
        %v874 = vpack.c.b16 %v809, %v808
        %v875 = vpack.c.b16 %v811, %v810
        %v876 = vpack.c.b16 %v813, %v812
        %v877 = vpack.c.b16 %v815, %v814
        %v878 = vpack.c.b16 %v817, %v816
        %v879 = vpack.c.b16 %v819, %v818
        %v880 = vpack.c.b16 %v821, %v820
        %v881 = vpack.c.b16 %v823, %v822
        %v882 = vpack.c.b16 %v825, %v824
        %v883 = vpack.c.b16 %v827, %v826
        %v884 = vpack.c.b16 %v829, %v828
        %v885 = vpack.c.b16 %v831, %v830
        %v886 = vpack.c.b16 %v833, %v832
        %v887 = vpack.c.b16 %v835, %v834
        %v888 = vpack.c.b16 %v837, %v836
        %v889 = vpack.c.b16 %v839, %v838
        %v890 = vpack.c.b16 %v841, %v840
        %v891 = vpack.c.b16 %v843, %v842
        %v892 = vpack.c.b16 %v845, %v844
        %v893 = vpack.c.b16 %v847, %v846
        %v894 = vpack.c.b16 %v849, %v848
        %v895 = vpack.c.b16 %v851, %v850
        %v896 = vpack.c.b16 %v853, %v852
        %v897 = vpack.c.b16 %v855, %v854
        %940 = vst [vmem:[%s176] sm:$0xff] %v856
        %941 = vst [vmem:[%s176 + $0x8] sm:$0xff] %v857
        %942 = vst [vmem:[%s176 + $0x10] sm:$0xff] %v858
        %943 = vst [vmem:[%s176 + $0x18] sm:$0xff] %v859
        %944 = vst [vmem:[%s176 + $0x20] sm:$0xff] %v860
        %945 = vst [vmem:[%s176 + $0x28] sm:$0xff] %v861
        %946 = vst [vmem:[%s176 + $0x30] sm:$0xff] %v862
        %947 = vst [vmem:[%s176 + $0x38] sm:$0xff] %v863
        %948 = vst [vmem:[%s176 + $0x40] sm:$0xff] %v864
        %949 = vst [vmem:[%s176 + $0x48] sm:$0xff] %v865
        %950 = vst [vmem:[%s176 + $0x50] sm:$0xff] %v866
        %951 = vst [vmem:[%s176 + $0x58] sm:$0xff] %v867
        %952 = vst [vmem:[%s176 + $0x60] sm:$0xff] %v868
        %953 = vst [vmem:[%s176 + $0x68] sm:$0xff] %v869
        %954 = vst [vmem:[%s176 + $0x70] sm:$0xff] %v870
        %955 = vst [vmem:[%s176 + $0x78] sm:$0xff] %v871
        %956 = vst [vmem:[%s176 + $0x80] sm:$0xff] %v872
        %957 = vst [vmem:[%s176 + $0x88] sm:$0xff] %v873
        %958 = vst [vmem:[%s176 + $0x90] sm:$0xff] %v874
        %959 = vst [vmem:[%s176 + $0x98] sm:$0xff] %v875
        %960 = vst [vmem:[%s176 + $0xa0] sm:$0xff] %v876
        %961 = vst [vmem:[%s176 + $0xa8] sm:$0xff] %v877
        %962 = vst [vmem:[%s176 + $0xb0] sm:$0xff] %v878
        %963 = vst [vmem:[%s176 + $0xb8] sm:$0xff] %v879
        %964 = vst [vmem:[%s176 + $0xc0] sm:$0xff] %v880
        %965 = vst [vmem:[%s176 + $0xc8] sm:$0xff] %v881
        %966 = vst [vmem:[%s176 + $0xd0] sm:$0xff] %v882
        %967 = vst [vmem:[%s176 + $0xd8] sm:$0xff] %v883
        %968 = vst [vmem:[%s176 + $0xe0] sm:$0xff] %v884
        %969 = vst [vmem:[%s176 + $0xe8] sm:$0xff] %v885
        %970 = vst [vmem:[%s176 + $0xf0] sm:$0xff] %v886
        %971 = vst [vmem:[%s176 + $0xf8] sm:$0xff] %v887
        %972 = vst [vmem:[%s176 + $0x100] sm:$0xff] %v888
        %973 = vst [vmem:[%s176 + $0x108] sm:$0xff] %v889
        %974 = vst [vmem:[%s176 + $0x110] sm:$0xff] %v890
        %975 = vst [vmem:[%s176 + $0x118] sm:$0xff] %v891
        %976 = vst [vmem:[%s176 + $0x120] sm:$0xff] %v892
        %977 = vst [vmem:[%s176 + $0x128] sm:$0xff] %v893
        %978 = vst [vmem:[%s176 + $0x130] sm:$0xff] %v894
        %979 = vst [vmem:[%s176 + $0x138] sm:$0xff] %v895
        %980 = vst [vmem:[%s176 + $0x140] sm:$0xff] %v896
        %981 = vst [vmem:[%s176 + $0x148] sm:$0xff] %v897
        %s982 = sand.u32 %s93, 1
        %s983 = scalar_lea.sflag [#allocation3], %s982
        %s984 = sand.u32 %s93, 1
        %s985 = smul.addr %s984, 336
        %s986 = scalar_lea.vmem [#allocation2], %s985
        // Predicated region
        $region33: #{tpu_custom_call.1} parent=31 // pred_check
          %p987 = pneg %p103
        $region34: #{tpu_custom_call.1} parent=31 // pred_check_branch
          %989 = sbr.rel (%p987) target = $region36
        $region35: #{tpu_custom_call.1} parent=31 // pred_region
          %s990 = smul.u32 42, %s17
          %s991 = ssub.s32 167, %s990
          %p992 = scmp.lt.s32.totalorder %s991, 42
          %s993 = scalar_select %p992, %s991, 42
          %s994 = smul.u32 64, %s993
          %s995 = smul.u32 %s994, 2
          %s997 = ssub.s32 5376, %s995
          %998 = vsyncadd %s983, %s997
          %p999 = scmp.ne.s32.totalorder 0, %s995
          %s1000 = smul.addr %s990, 2
          %s1001 = smul.addr %s1000, 64
          %s1002 = scalar_lea.hbm %s3, %s1001
          %s1003 = smul.u32 8, %s993
          %s1004 = sshll.u32 %s986, 4
          %s1005 = int_to_ptr.vmem [resolvable:$true] %s1004
          %s1006 = sshll.u32 %s1003, 4
          %1010 = dma.vmem_to_hbm [thread:$0]  (%p999), %s1005, %s1006, %s1002, %s983, 128, 128, 8
        $region36: #{tpu_custom_call.1} parent=31 // pred_fallthru
          _
      $region32: #{tpu_custom_call.1} parent=5 // pred_fallthru
        _
      %p1011 = scmp.le.s32.totalorder 2, %s12
      // Predicated region
      $region37: #{tpu_custom_call.1} parent=5 // pred_check
        %p1012 = pneg %p1011
      $region38: #{tpu_custom_call.1} parent=5 // pred_check_branch
        %1014 = sbr.rel (%p1012) target = $region40
      $region39: #{tpu_custom_call.1} parent=5 // pred_region
        %s1015 = ssub.s32 %s12, 2
        // Predicated region
        $region41: #{tpu_custom_call.1} parent=39 // pred_check
          %p1016 = pneg %p109
        $region42: #{tpu_custom_call.1} parent=39 // pred_check_branch
          %1018 = sbr.rel (%p1016) target = $region44
        $region43: #{tpu_custom_call.1} parent=39 // pred_region
          %s1019 = sand.u32 %s94, 1
          %s1020 = scalar_lea.sflag [#allocation3], %s1019
          %s1021 = sand.u32 %s94, 1
          %s1022 = smul.addr %s1021, 336
          %s1023 = scalar_lea.vmem [#allocation2], %s1022
          %1024 = dma.done %s1020, 5376
        $region44: #{tpu_custom_call.1} parent=39 // pred_fallthru
          _
      $region40: #{tpu_custom_call.1} parent=5 // pred_fallthru
        _
    $region6: #{tpu_custom_call.1} parent=1 // loop_footer
      %s16 = sadd.s32 1, %s12
    $region7: #{tpu_custom_call.1} parent=1 // loop_footer_branch
      %11 = sbr.rel target = $region3
    $region8: #{tpu_custom_call.1} parent=1 // loop_exit
      _
    %1025 = vsyncpa [#allocation3], 1
    %s1026 = scalar_lea.sflag [#allocation3], 1
    %1027 = vsyncpa %s1026, 1

</llo_original>
